<compile_context>
chip_gen: v7x
topology: tpu7x:2x2x1
jax: 0.10.0
libtpu: 0.0.40
codegen_flags: <defaults>
</compile_context>

<pallas_src>
import functools

import jax
import jax.numpy as jnp
from jax.experimental import pallas as pl
from jax.experimental.pallas import tpu as pltpu


# ----------------------------------------------------------------------------
# Main path: one (row_tile, H*W) tile per grid step, reduction along lanes.
# ----------------------------------------------------------------------------
def _scale_rows_kernel(x_ref, o_ref, *, scale):
    # x_ref / o_ref tile: (row_tile, HW) — each row is one (batch, channel)
    # spatial map; the reduction runs along the lane axis.
    x = x_ref[...].astype(jnp.float32)
    xsum = jnp.sum(x, axis=-1, keepdims=True)            # (row_tile, 1), f32
    # EUP approximate reciprocal (separate issue slot) + one Newton-Raphson
    # step for full f32 accuracy; fold H*W*0.5 into the per-row scalar.
    inv = pl.reciprocal(xsum, approx=True)
    inv = inv * (2.0 - xsum * inv)
    o_ref[...] = (x * (inv * scale)).astype(o_ref.dtype)


# ----------------------------------------------------------------------------
# Fallback path (very large H*W): lane-tiled two-pass scheme.
# Pass 1: accumulate per-row sums across lane chunks (output-resident acc).
# Pass 2: scale each lane chunk by the precomputed per-row reciprocal.
# ----------------------------------------------------------------------------
def _row_sum_kernel(x_ref, sum_ref, *, hw, lane_tile):
    j = pl.program_id(1)

    @pl.when(j == 0)
    def _():
        sum_ref[...] = jnp.zeros_like(sum_ref)

    x = x_ref[...].astype(jnp.float32)
    # Mask lanes beyond the real row length (ragged last lane block).
    col = j * lane_tile + jax.lax.broadcasted_iota(jnp.int32, x.shape, 1)
    x = jnp.where(col < hw, x, 0.0)
    sum_ref[...] += jnp.sum(x, axis=-1, keepdims=True)


def _apply_scale_kernel(sum_ref, x_ref, o_ref, *, scale):
    xsum = sum_ref[...]                                   # (row_tile, 1), f32
    inv = pl.reciprocal(xsum, approx=True)
    inv = inv * (2.0 - xsum * inv)
    o_ref[...] = (x_ref[...].astype(jnp.float32) * (inv * scale)).astype(o_ref.dtype)


def attention_mask(x):
    """Pallas TPU implementation of Attention_mask.forward for NCHW input x.

    out = x / sum(x, axis=(2, 3), keepdims=True) * H * W * 0.5
    """
    N, C, H, W = x.shape
    rows = N * C
    hw = H * W
    scale = float(H) * float(W) * 0.5

    dtype = x.dtype
    itemsize = jnp.dtype(dtype).itemsize

    # Flatten to (N*C, H*W): reduction axis on the fast lane dimension.
    x2d = x.reshape(rows, hw)

    # Dtype-aware sublane alignment: 8 rows for 32-bit, 16 for 16-bit,
    # 32 for 8-bit (packed rows travel in pairs/quads).
    min_align = max(8, (8 * 4) // itemsize)
    rows_up = -(-rows // min_align) * min_align

    # Generation-aware VMEM budget and tile target.
    try:
        vmem_cap = int(pltpu.get_tpu_info().vmem_capacity_bytes)
    except Exception:  # pragma: no cover - conservative default
        vmem_cap = 64 << 20
    vmem_limit = int(max(8 << 20, min(vmem_cap // 2, 32 << 20)))
    # ~4 MiB tiles on 128 MiB-VMEM parts (v5e/v6e), ~2 MiB on 64 MiB (v7x).
    target_tile_bytes = (4 << 20) if vmem_cap >= (96 << 20) else (2 << 20)

    # Honest per-tile VMEM accounting: double-buffered input + output tiles
    # (4x) plus in-kernel f32 temporaries (~3 f32 tiles worth).
    budget_factor = 4.0 + 3.0 * (4.0 / itemsize)
    max_tile_bytes = int(vmem_limit / budget_factor)

    row_bytes = hw * itemsize
    rows_per_tile_cap = (max_tile_bytes // max(row_bytes, 1)) // min_align * min_align

    if rows_per_tile_cap >= min_align:
        # -------------------- main path: full rows per tile --------------------
        row_tile = max(min_align,
                       (target_tile_bytes // row_bytes) // min_align * min_align)
        row_tile = min(row_tile, rows_up, rows_per_tile_cap)
        # Megacore (v7x): ensure >= 2 grid steps whenever there are enough rows.
        if rows_up >= 2 * min_align and row_tile > rows_up // 2:
            row_tile = max(min_align, (rows_up // 2) // min_align * min_align)
        row_tile = int(row_tile)
        grid_rows = pl.cdiv(rows, row_tile)

        out2d = pl.pallas_call(
            functools.partial(_scale_rows_kernel, scale=scale),
            out_shape=jax.ShapeDtypeStruct((rows, hw), dtype),
            grid_spec=pltpu.PrefetchScalarGridSpec(
                num_scalar_prefetch=0,
                grid=(grid_rows,),
                in_specs=[pl.BlockSpec((row_tile, hw), lambda i: (i, 0))],
                out_specs=pl.BlockSpec((row_tile, hw), lambda i: (i, 0)),
            ),
            compiler_params=pltpu.CompilerParams(
                dimension_semantics=("parallel",),
                vmem_limit_bytes=vmem_limit,
            ),
        )(x2d)
    else:
        # ---------------- fallback path: lane-tiled two-pass -------------------
        row_tile = min_align
        lane_tile_cap = (max_tile_bytes // (row_tile * itemsize)) // 128 * 128
        lane_tile = int(max(128, min(lane_tile_cap, 8192, ((hw + 127) // 128) * 128)))
        grid_rows = pl.cdiv(rows, row_tile)
        grid_lanes = pl.cdiv(hw, lane_tile)

        sums = pl.pallas_call(
            functools.partial(_row_sum_kernel, hw=hw, lane_tile=lane_tile),
            out_shape=jax.ShapeDtypeStruct((rows, 1), jnp.float32),
            grid_spec=pltpu.PrefetchScalarGridSpec(
                num_scalar_prefetch=0,
                grid=(grid_rows, grid_lanes),
                in_specs=[pl.BlockSpec((row_tile, lane_tile), lambda i, j: (i, j))],
                out_specs=pl.BlockSpec((row_tile, 1), lambda i, j: (i, 0)),
            ),
            compiler_params=pltpu.CompilerParams(
                dimension_semantics=("parallel", "arbitrary"),
                vmem_limit_bytes=vmem_limit,
            ),
        )(x2d)

        out2d = pl.pallas_call(
            functools.partial(_apply_scale_kernel, scale=scale),
            out_shape=jax.ShapeDtypeStruct((rows, hw), dtype),
            grid_spec=pltpu.PrefetchScalarGridSpec(
                num_scalar_prefetch=0,
                grid=(grid_rows, grid_lanes),
                in_specs=[pl.BlockSpec((row_tile, 1), lambda i, j: (i, 0)),
                          pl.BlockSpec((row_tile, lane_tile), lambda i, j: (i, j))],
                out_specs=pl.BlockSpec((row_tile, lane_tile), lambda i, j: (i, j)),
            ),
            compiler_params=pltpu.CompilerParams(
                dimension_semantics=("parallel", "parallel"),
                vmem_limit_bytes=vmem_limit,
            ),
        )(sums, x2d)

    return out2d.reshape(N, C, H, W)


def _reference(x):
    xsum = jnp.sum(x, axis=(2, 3), keepdims=True)
    return x / xsum * x.shape[2] * x.shape[3] * 0.5


if __name__ == "__main__":
    key = jax.random.PRNGKey(0)
    # Small shapes consistent with the module: NCHW = (2, 4, 16, 16).
    x = jax.random.uniform(key, (2, 4, 16, 16), dtype=jnp.float32) + 0.1

    out = attention_mask(x)
    out = jax.block_until_ready(out)

    ref = _reference(x)
    assert out.shape == ref.shape
    assert jnp.allclose(out, ref, atol=1e-5, rtol=1e-5), "mismatch vs reference"

    print("KERNEL_OK")
</pallas_src>

<mosaic_0001>
module attributes {stable_mosaic.version = 11 : i64} {
  func.func @_scale_rows_kernel(%arg0: i32, %arg1: memref<8x256xf32, #tpu.memory_space<vmem>>, %arg2: memref<8x256xf32, #tpu.memory_space<vmem>>) attributes {dimension_semantics = [#tpu.dimension_semantics<parallel>], iteration_bounds = array<i64: 1>, scalar_prefetch = 0 : i64, scratch_operands = 0 : i64, tpu.core_type = #tpu.core_type<tc>, window_params = [{transform_indices = @transform_0, window_bounds = array<i64: 8, 256>}, {transform_indices = @transform_1, window_bounds = array<i64: 8, 256>}]} {
    %c0 = arith.constant 0 : index
    %c0_0 = arith.constant 0 : index
    %0 = vector.load %arg1[%c0, %c0_0] : memref<8x256xf32, #tpu.memory_space<vmem>>, vector<8x256xf32>
    %cst = arith.constant dense<0.000000e+00> : vector<8xf32>
    %1 = vector.multi_reduction <add>, %0, %cst [1] : vector<8x256xf32> to vector<8xf32>
    %2 = vector.shape_cast %1 : vector<8xf32> to vector<8x1xf32>
    %3 = tpu.reciprocal %2 {approx = true} : vector<8x1xf32> -> vector<8x1xf32>
    %4 = arith.mulf %2, %3 : vector<8x1xf32>
    %cst_1 = arith.constant 2.000000e+00 : f32
    %5 = vector.broadcast %cst_1 : f32 to vector<8x1xf32>
    %6 = arith.subf %5, %4 : vector<8x1xf32>
    %7 = arith.mulf %3, %6 : vector<8x1xf32>
    %cst_2 = arith.constant 1.280000e+02 : f32
    %8 = vector.broadcast %cst_2 : f32 to vector<8x1xf32>
    %9 = arith.mulf %7, %8 : vector<8x1xf32>
    %10 = vector.broadcast %9 : vector<8x1xf32> to vector<8x256xf32>
    %11 = arith.mulf %0, %10 : vector<8x256xf32>
    %c0_3 = arith.constant 0 : index
    %c0_4 = arith.constant 0 : index
    %12 = vector.load %arg2[%c0_3, %c0_4] : memref<8x256xf32, #tpu.memory_space<vmem>>, vector<8x256xf32>
    tpu.vector_store %arg2[%c0_3, %c0_4], %11 {strides = array<i32>} : memref<8x256xf32, #tpu.memory_space<vmem>>, vector<8x256xf32>,
    return
  }
  func.func @transform_0(%arg0: i32) -> (i32, i32) {
    %c0_i32 = arith.constant 0 : i32
    %c0_i32_0 = arith.constant 0 : i32
    return %arg0, %c0_i32 : i32, i32
  }
  func.func @transform_1(%arg0: i32) -> (i32, i32) {
    %c0_i32 = arith.constant 0 : i32
    %c0_i32_0 = arith.constant 0 : i32
    return %arg0, %c0_i32 : i32, i32
  }
}

</mosaic_0001>

<llo_original>
// kernel: tpu_custom_call.1
$region0: #{tpu_custom_call.1}
  #allocation0 [shape = 'u32[]', space=smem, size = 0x4, offset = 0x4, fixed_abs, tag = 'smem constant byte address 0x4 - core index']
  #allocation1 [shape = 'u32[144,128]{1,0:T(1,128)}', space=vmem, size = 0x12000, scoped, tag = 'internal scratch']
  %s0 = inlined_call_operand.hbm [shape: f32[8,256], index: 0, kind: input, shape index: {}]
  %s1 = inlined_call_operand.hbm [shape: f32[8,256], index: 1, kind: output, shape index: {}]
  %s2 = sld [smem:[#allocation0]]
  $region18: #{tpu_custom_call.1} parent=0
    _
  %s4 = ssub.s32 1, %s2
  %s5 = scalar_select 0, %s4, %s2
  $region1: #{tpu_custom_call.1} parent=0
    #allocation2 [shape = 'u8[8192]{0}', space=vmem, size = 0x2000, scoped, tag = 'input window, operand 0, single buffered']
    #allocation3 [shape = 's32[1]{0}', space=sflag, size = 0x4, scoped, tag = 'scoped memory for tpu_custom_call.1']
    #allocation4 [shape = 's32[1]{0}', space=sflag, size = 0x4, scoped, tag = 'scoped memory for tpu_custom_call.1']
    #allocation5 [shape = 'u8[8192]{0}', space=vmem, size = 0x2000, scoped, tag = 'output window, operand 0, single buffered']
    %6 = vsyncpa [#allocation3], 0
    %7 = vsyncpa [#allocation4], 0
    // Predicated region
    $region2: #{tpu_custom_call.1} parent=1 // pred_check
      _
    $region3: #{tpu_custom_call.1} parent=1 // pred_check_branch
      %9 = sbr.rel (0) target = $region5
    $region4: #{tpu_custom_call.1} parent=1 // pred_region
      %s11 = ssub.s32 256, 256
      %12 = vsyncadd [#allocation3], %s11
      %s14 = sshll.u32 [#allocation2], 4
      %s15 = int_to_ptr.vmem [resolvable:$true] %s14
      %17 = dma.hbm_to_vmem [thread:$0]  %s0, 256, %s15, [#allocation3]
    $region5: #{tpu_custom_call.1} parent=1 // pred_fallthru
      _
    // Predicated region
    $region6: #{tpu_custom_call.1} parent=1 // pred_check
      _
    $region7: #{tpu_custom_call.1} parent=1 // pred_check_branch
      %19 = sbr.rel (0) target = $region9
    $region8: #{tpu_custom_call.1} parent=1 // pred_region
      %20 = dma.done [#allocation3], 256
    $region9: #{tpu_custom_call.1} parent=1 // pred_fallthru
      _
    %v21 = vld [vmem:[#allocation2] sm:$0xff]
    %v22 = vld [vmem:[#allocation2 + $0x8] sm:$0xff]
    %v23 = vadd.f32 %v21, %v22
    %24 = vadd.xlane.f32.xlu0 %v23
    %v25 = vpop.xlane.xlu0 %24
    %v26 = vrcp.pop %v25
    %v27 = vmul.f32 %v25, %v26
    %v28 = vsub.f32 2.0, %v27
    %v29 = vmul.f32 %v26, %v28
    %v30 = vmul.f32 %v29, 128.0
    %v31 = vmul.f32 %v21, %v30
    %v32 = vmul.f32 %v22, %v30
    %33 = vst [vmem:[#allocation5] sm:$0xff] %v31
    %34 = vst [vmem:[#allocation5 + $0x8] sm:$0xff] %v32
    // Predicated region
    $region10: #{tpu_custom_call.1} parent=1 // pred_check
      _
    $region11: #{tpu_custom_call.1} parent=1 // pred_check_branch
      %36 = sbr.rel (0) target = $region13
    $region12: #{tpu_custom_call.1} parent=1 // pred_region
      %s38 = ssub.s32 256, 256
      %39 = vsyncadd [#allocation4], %s38
      %s41 = sshll.u32 [#allocation5], 4
      %s42 = int_to_ptr.vmem [resolvable:$true] %s41
      %44 = dma.vmem_to_hbm [thread:$0]  %s42, 256, %s1, [#allocation4]
    $region13: #{tpu_custom_call.1} parent=1 // pred_fallthru
      _
    // Predicated region
    $region14: #{tpu_custom_call.1} parent=1 // pred_check
      _
    $region15: #{tpu_custom_call.1} parent=1 // pred_check_branch
      %46 = sbr.rel (0) target = $region17
    $region16: #{tpu_custom_call.1} parent=1 // pred_region
      %47 = dma.done [#allocation4], 256
    $region17: #{tpu_custom_call.1} parent=1 // pred_fallthru
      _
    %48 = vsyncpa [#allocation3], 1
    %49 = vsyncpa [#allocation4], 1

</llo_original>
